<compile_context>
chip_gen: v6e
topology: v6e:2x2x1
jax: 0.10.0
libtpu: 0.0.40
codegen_flags: <defaults>
</compile_context>

<pallas_src>
import functools

import jax
import jax.numpy as jnp
from jax.experimental import pallas as pl
from jax.experimental.pallas import tpu as pltpu

_MiB = 1024 * 1024


def _cdiv(a, b):
    return -(-a // b)


def _tpu_tier():
    """Generation-aware byte budgets (block target, slab cap, VMEM cap, min steps)."""
    try:
        info = pltpu.get_tpu_info()
        vmem_cap = int(getattr(info, "vmem_capacity_bytes", 128 * _MiB))
    except Exception:
        vmem_cap = 128 * _MiB
    if vmem_cap <= 64 * _MiB:
        # v7x-class: 64 MiB VMEM per TensorCore, 2 TCs share a "parallel" grid,
        # so prefer >= 4 grid steps (2 per core) and keep blocks/VMEM tighter.
        return dict(target_bytes=4 * _MiB, slab_cap=8 * _MiB,
                    vmem_hard_cap=36 * _MiB, min_steps=4)
    # v5e / v6e: 128 MiB VMEM, single TensorCore.
    return dict(target_bytes=6 * _MiB, slab_cap=10 * _MiB,
                vmem_hard_cap=48 * _MiB, min_steps=2)


def _pick_block_batch(batch, per_batch_bytes, target_bytes, min_steps):
    """Largest Bb whose slab fits the byte target, preferring >= min_steps grid
    steps, then re-balanced so ragged blocks stay near-equal (same step count)."""
    bb = max(1, min(batch, int(target_bytes // max(1, per_batch_bytes))))
    if min_steps > 1 and batch > 1:
        cap = max(1, (batch - 1) // (min_steps - 1))
        bb = min(bb, cap)
    bb = _cdiv(batch, _cdiv(batch, bb))     # balance without changing step count
    return bb


# ----------------------------------------------------------------------------
# Single-pass fused kernel (per-batch slab fits a VMEM block).
# ----------------------------------------------------------------------------
def _channel_gate_kernel(x_ref, w1_ref, b1_ref, w2_ref, b2_ref, o_ref):
    x = x_ref[...]                                     # (Bb, C, HW), native dtype
    bb = x.shape[0]
    inv_hw = 1.0 / x.shape[-1]

    # Spatial pooling over the lane (HW) axis without materializing a shared
    # full-block f32 copy: widen only inside the sum, keep max in native dtype.
    avg = jnp.sum(x, axis=-1, dtype=jnp.float32) * inv_hw       # (Bb, C) f32
    mx = jnp.max(x, axis=-1).astype(jnp.float32)                # (Bb, C) f32

    # One fused MLP over the stacked pooled rows instead of two tiny matmuls.
    pooled = jnp.concatenate([avg, mx], axis=0)                 # (2*Bb, C)
    h = jnp.maximum(
        jnp.dot(pooled, w1_ref[...], preferred_element_type=jnp.float32)
        + b1_ref[...], 0.0)
    att2 = jnp.dot(h, w2_ref[...], preferred_element_type=jnp.float32) + b2_ref[...]

    # `channel_att_sum` starts as True in the reference forward -> contributes +1.
    att = 1.0 + att2[:bb] + att2[bb:]                           # (Bb, C)
    scale = jax.nn.sigmoid(att)                                 # (Bb, C) f32

    # Multiply in f32, cast once on store (lane-dense store over HW).
    o_ref[...] = (x.astype(jnp.float32) * scale[:, :, None]).astype(o_ref.dtype)


# ----------------------------------------------------------------------------
# Two-pass HW-tiled fallback for slabs that exceed the block budget.
# Pass 1: accumulate sum/max per (b, C) across HW tiles, compute the gate.
# Pass 2: multiply each HW tile by the per-(b, C) gate.
# ----------------------------------------------------------------------------
def _pool_gate_kernel(hw, thw, need_mask,
                      x_ref, w1_ref, b1_ref, w2_ref, b2_ref, scale_ref,
                      sum_sc, max_sc):
    t = pl.program_id(1)
    nt = pl.num_programs(1)
    bb = x_ref.shape[0]

    @pl.when(t == 0)
    def _():
        sum_sc[...] = jnp.zeros_like(sum_sc)
        max_sc[...] = jnp.full_like(max_sc, -jnp.inf)

    x = x_ref[...].astype(jnp.float32)                 # (Bb, C, thw) tile
    if need_mask:                                      # static: ragged last HW tile
        lane = jax.lax.broadcasted_iota(jnp.int32, x.shape, 2) + t * thw
        valid = lane < hw
        xs = jnp.where(valid, x, 0.0)
        xm = jnp.where(valid, x, -jnp.inf)
    else:
        xs = x
        xm = x
    sum_sc[...] = sum_sc[...] + jnp.sum(xs, axis=-1)
    max_sc[...] = jnp.maximum(max_sc[...], jnp.max(xm, axis=-1))

    @pl.when(t == nt - 1)
    def _():
        avg = sum_sc[...] * (1.0 / hw)
        pooled = jnp.concatenate([avg, max_sc[...]], axis=0)    # (2*Bb, C)
        h = jnp.maximum(
            jnp.dot(pooled, w1_ref[...], preferred_element_type=jnp.float32)
            + b1_ref[...], 0.0)
        att2 = (jnp.dot(h, w2_ref[...], preferred_element_type=jnp.float32)
                + b2_ref[...])
        att = 1.0 + att2[:bb] + att2[bb:]
        scale_ref[...] = jax.nn.sigmoid(att)[:, :, None]        # (Bb, C, 1)


def _apply_scale_kernel(x_ref, scale_ref, o_ref):
    o_ref[...] = (x_ref[...].astype(jnp.float32) * scale_ref[...]).astype(o_ref.dtype)


# ----------------------------------------------------------------------------
# Wrapper
# ----------------------------------------------------------------------------
def channel_gate(x_nchw, w1, b1, w2, b2, *, two_pass=None, target_bytes=None):
    """x_nchw: (B, C, H, W). w1: (C, C//r), b1: (C//r,), w2: (C//r, C), b2: (C,)."""
    B, C, H, W = x_nchw.shape
    HW = H * W
    hid = w1.shape[1]

    tier = _tpu_tier()
    tgt = int(target_bytes) if target_bytes is not None else tier["target_bytes"]

    # Free reshape of the contiguous NCHW tensor (no HBM transpose).
    x = x_nchw.reshape(B, C, HW)
    w1f = w1.astype(jnp.float32)
    w2f = w2.astype(jnp.float32)
    b1_2d = b1.reshape(1, hid).astype(jnp.float32)
    b2_2d = b2.reshape(1, C).astype(jnp.float32)

    per_batch_bytes = C * HW * x.dtype.itemsize
    use_two_pass = two_pass if two_pass is not None else (per_batch_bytes > tier["slab_cap"])

    if not use_two_pass:
        Bb = _pick_block_batch(B, per_batch_bytes, tgt, tier["min_steps"])
        n_b = _cdiv(B, Bb)                      # cdiv grid; ragged last block OK
        block_bytes = Bb * per_batch_bytes
        vmem_limit = int(min(tier["vmem_hard_cap"],
                             max(24 * _MiB, 4 * block_bytes + 4 * _MiB)))

        out = pl.pallas_call(
            _channel_gate_kernel,
            out_shape=jax.ShapeDtypeStruct((B, C, HW), x_nchw.dtype),
            grid_spec=pltpu.PrefetchScalarGridSpec(
                num_scalar_prefetch=0,
                grid=(n_b,),
                in_specs=[
                    pl.BlockSpec((Bb, C, HW), lambda b: (b, 0, 0)),
                    pl.BlockSpec((C, hid), lambda b: (0, 0)),
                    pl.BlockSpec((1, hid), lambda b: (0, 0)),
                    pl.BlockSpec((hid, C), lambda b: (0, 0)),
                    pl.BlockSpec((1, C), lambda b: (0, 0)),
                ],
                out_specs=pl.BlockSpec((Bb, C, HW), lambda b: (b, 0, 0)),
            ),
            compiler_params=pltpu.CompilerParams(
                dimension_semantics=("parallel",),
                vmem_limit_bytes=vmem_limit,
            ),
        )(x, w1f, b1_2d, w2f, b2_2d)
        return out.reshape(B, C, H, W)

    # --- Two-pass HW-tiled fallback ---
    lane_budget = max(1, tgt // (C * x.dtype.itemsize))
    thw = max(128, (lane_budget // 128) * 128)
    if thw >= HW:
        thw = HW
    n_t = _cdiv(HW, thw)
    need_mask = (HW % thw) != 0
    tile_bytes = C * thw * x.dtype.itemsize
    vmem_limit = int(min(tier["vmem_hard_cap"],
                         max(24 * _MiB, 4 * tile_bytes + 4 * _MiB)))

    pool_kernel = functools.partial(_pool_gate_kernel, HW, thw, need_mask)
    scale = pl.pallas_call(
        pool_kernel,
        out_shape=jax.ShapeDtypeStruct((B, C, 1), jnp.float32),
        grid_spec=pltpu.PrefetchScalarGridSpec(
            num_scalar_prefetch=0,
            grid=(B, n_t),
            in_specs=[
                pl.BlockSpec((1, C, thw), lambda b, t: (b, 0, t)),
                pl.BlockSpec((C, hid), lambda b, t: (0, 0)),
                pl.BlockSpec((1, hid), lambda b, t: (0, 0)),
                pl.BlockSpec((hid, C), lambda b, t: (0, 0)),
                pl.BlockSpec((1, C), lambda b, t: (0, 0)),
            ],
            out_specs=pl.BlockSpec((1, C, 1), lambda b, t: (b, 0, 0)),
            scratch_shapes=[pltpu.VMEM((1, C), jnp.float32),
                            pltpu.VMEM((1, C), jnp.float32)],
        ),
        compiler_params=pltpu.CompilerParams(
            dimension_semantics=("parallel", "arbitrary"),
            vmem_limit_bytes=vmem_limit,
        ),
    )(x, w1f, b1_2d, w2f, b2_2d)

    out = pl.pallas_call(
        _apply_scale_kernel,
        out_shape=jax.ShapeDtypeStruct((B, C, HW), x_nchw.dtype),
        grid_spec=pltpu.PrefetchScalarGridSpec(
            num_scalar_prefetch=0,
            grid=(B, n_t),
            in_specs=[
                pl.BlockSpec((1, C, thw), lambda b, t: (b, 0, t)),
                pl.BlockSpec((1, C, 1), lambda b, t: (b, 0, 0)),
            ],
            out_specs=pl.BlockSpec((1, C, thw), lambda b, t: (b, 0, t)),
        ),
        compiler_params=pltpu.CompilerParams(
            dimension_semantics=("parallel", "parallel"),
            vmem_limit_bytes=vmem_limit,
        ),
    )(x, scale)
    return out.reshape(B, C, H, W)


# ----------------------------------------------------------------------------
# Pure-JAX reference of the PyTorch forward (NCHW).
# ----------------------------------------------------------------------------
def channel_gate_ref(x, w1, b1, w2, b2):
    B, C, H, W = x.shape
    xf = x.astype(jnp.float32).reshape(B, C, H * W)
    avg = jnp.mean(xf, axis=2)                        # (B, C)
    mx = jnp.max(xf, axis=2)                          # (B, C)

    def mlp(v):
        return jnp.maximum(v @ w1 + b1, 0.0) @ w2 + b2

    att = 1.0 + mlp(avg) + mlp(mx)                    # (B, C)
    scale = jax.nn.sigmoid(att)[:, :, None, None]     # (B, C, 1, 1)
    return (x.astype(jnp.float32) * scale).astype(x.dtype)


def _make_params(key, C, reduction_ratio):
    hid = C // reduction_ratio
    kw1, kb1, kw2, kb2 = jax.random.split(key, 4)
    bound1 = 1.0 / jnp.sqrt(jnp.float32(C))
    w1 = jax.random.uniform(kw1, (C, hid), jnp.float32, -bound1, bound1)
    b1 = jax.random.uniform(kb1, (hid,), jnp.float32, -bound1, bound1)
    bound2 = 1.0 / jnp.sqrt(jnp.float32(hid))
    w2 = jax.random.uniform(kw2, (hid, C), jnp.float32, -bound2, bound2)
    b2 = jax.random.uniform(kb2, (C,), jnp.float32, -bound2, bound2)
    return w1, b1, w2, b2


if __name__ == "__main__":
    key = jax.random.PRNGKey(0)
    k1, k2, k3, k4, kp1, kp2, kp3, kp4 = jax.random.split(key, 8)

    # Case 1: ChannelGate(gate_channels=64, reduction_ratio=16), B=2.
    B, C, H, W = 2, 64, 16, 16
    w1, b1, w2, b2 = _make_params(kp1, C, reduction_ratio=16)
    x = jax.random.normal(k1, (B, C, H, W), dtype=jnp.float32)
    y = jax.block_until_ready(channel_gate(x, w1, b1, w2, b2))
    y_ref = channel_gate_ref(x, w1, b1, w2, b2)
    assert y.shape == (B, C, H, W)
    assert jnp.allclose(y, y_ref, rtol=1e-5, atol=1e-5), "case1 mismatch vs JAX reference"

    # Case 2: multi-batch-per-block path (Bb > 1).
    B2, C2, H2, W2 = 8, 32, 8, 8
    w1b, b1b, w2b, b2b = _make_params(kp2, C2, reduction_ratio=8)
    x2 = jax.random.normal(k2, (B2, C2, H2, W2), dtype=jnp.float32)
    y2 = jax.block_until_ready(channel_gate(x2, w1b, b1b, w2b, b2b))
    y2_ref = channel_gate_ref(x2, w1b, b1b, w2b, b2b)
    assert jnp.allclose(y2, y2_ref, rtol=1e-5, atol=1e-5), "case2 mismatch vs JAX reference"

    # Case 3: ragged batch (cdiv grid, masked edge-block writeback).
    B3, C3, H3, W3 = 3, 64, 8, 8
    w1c, b1c, w2c, b2c = _make_params(kp3, C3, reduction_ratio=16)
    x3 = jax.random.normal(k3, (B3, C3, H3, W3), dtype=jnp.float32)
    y3 = jax.block_until_ready(channel_gate(x3, w1c, b1c, w2c, b2c))
    y3_ref = channel_gate_ref(x3, w1c, b1c, w2c, b2c)
    assert jnp.allclose(y3, y3_ref, rtol=1e-5, atol=1e-5), "case3 mismatch vs JAX reference"

    # Case 4: forced two-pass HW-tiled fallback (ragged HW tile + lane mask).
    B4, C4, H4, W4 = 3, 32, 16, 24          # HW = 384, tiled at 256
    w1d, b1d, w2d, b2d = _make_params(kp4, C4, reduction_ratio=8)
    x4 = jax.random.normal(k4, (B4, C4, H4, W4), dtype=jnp.float32)
    y4 = jax.block_until_ready(
        channel_gate(x4, w1d, b1d, w2d, b2d, two_pass=True, target_bytes=32 * 1024))
    y4_ref = channel_gate_ref(x4, w1d, b1d, w2d, b2d)
    assert jnp.allclose(y4, y4_ref, rtol=1e-5, atol=1e-5), "case4 mismatch vs JAX reference"

    print("KERNEL_OK")
</pallas_src>

<mosaic_0001>
module attributes {stable_mosaic.version = 11 : i64} {
  func.func @_channel_gate_kernel(%arg0: i32, %arg1: memref<1x64x256xf32, #tpu.memory_space<vmem>>, %arg2: memref<64x4xf32, #tpu.memory_space<vmem>>, %arg3: memref<1x4xf32, #tpu.memory_space<vmem>>, %arg4: memref<4x64xf32, #tpu.memory_space<vmem>>, %arg5: memref<1x64xf32, #tpu.memory_space<vmem>>, %arg6: memref<1x64x256xf32, #tpu.memory_space<vmem>>) attributes {dimension_semantics = [#tpu.dimension_semantics<parallel>], iteration_bounds = array<i64: 2>, scalar_prefetch = 0 : i64, scratch_operands = 0 : i64, tpu.core_type = #tpu.core_type<tc>, window_params = [{transform_indices = @transform_0, window_bounds = array<i64: 1, 64, 256>}, {pipeline_mode = #tpu.pipeline_mode<synchronous>, transform_indices = @transform_1, window_bounds = array<i64: 64, 4>}, {pipeline_mode = #tpu.pipeline_mode<synchronous>, transform_indices = @transform_2, window_bounds = array<i64: 1, 4>}, {pipeline_mode = #tpu.pipeline_mode<synchronous>, transform_indices = @transform_3, window_bounds = array<i64: 4, 64>}, {pipeline_mode = #tpu.pipeline_mode<synchronous>, transform_indices = @transform_4, window_bounds = array<i64: 1, 64>}, {transform_indices = @transform_5, window_bounds = array<i64: 1, 64, 256>}]} {
    %c0 = arith.constant 0 : index
    %c0_0 = arith.constant 0 : index
    %c0_1 = arith.constant 0 : index
    %0 = vector.load %arg1[%c0, %c0_0, %c0_1] : memref<1x64x256xf32, #tpu.memory_space<vmem>>, vector<1x64x256xf32>
    %cst = arith.constant dense<0.000000e+00> : vector<1x64xf32>
    %1 = vector.multi_reduction <add>, %0, %cst [2] : vector<1x64x256xf32> to vector<1x64xf32>
    %cst_2 = arith.constant 3.906250e-03 : f32
    %2 = vector.broadcast %cst_2 : f32 to vector<1x64xf32>
    %3 = arith.mulf %1, %2 : vector<1x64xf32>
    %cst_3 = arith.constant dense<0xFF800000> : vector<1x64xf32>
    %4 = vector.multi_reduction <maximumf>, %0, %cst_3 [2] : vector<1x64x256xf32> to vector<1x64xf32>
    %5 = tpu.concatenate %3, %4 in 0 : vector<1x64xf32>, vector<1x64xf32> -> vector<2x64xf32>
    %c0_4 = arith.constant 0 : index
    %c0_5 = arith.constant 0 : index
    %6 = vector.load %arg2[%c0_4, %c0_5] : memref<64x4xf32, #tpu.memory_space<vmem>>, vector<64x4xf32>
    %cst_6 = arith.constant dense<0.000000e+00> : vector<2x4xf32>
    %7 = tpu.matmul %5, %6, %cst_6 {dimension_numbers = #tpu.dot_dimension_numbers<[1], [0], [0], [1], [0, 0, 1, 1], [], []>} : vector<2x64xf32>, vector<64x4xf32>, vector<2x4xf32> -> vector<2x4xf32>
    %c0_7 = arith.constant 0 : index
    %c0_8 = arith.constant 0 : index
    %8 = vector.load %arg3[%c0_7, %c0_8] : memref<1x4xf32, #tpu.memory_space<vmem>>, vector<1x4xf32>
    %9 = vector.broadcast %8 : vector<1x4xf32> to vector<2x4xf32>
    %10 = arith.addf %7, %9 : vector<2x4xf32>
    %cst_9 = arith.constant 0.000000e+00 : f32
    %11 = vector.broadcast %cst_9 : f32 to vector<2x4xf32>
    %12 = arith.maximumf %10, %11 : vector<2x4xf32>
    %c0_10 = arith.constant 0 : index
    %c0_11 = arith.constant 0 : index
    %13 = vector.load %arg4[%c0_10, %c0_11] : memref<4x64xf32, #tpu.memory_space<vmem>>, vector<4x64xf32>
    %cst_12 = arith.constant dense<0.000000e+00> : vector<2x64xf32>
    %14 = tpu.matmul %12, %13, %cst_12 {dimension_numbers = #tpu.dot_dimension_numbers<[1], [0], [0], [1], [0, 0, 1, 1], [], []>} : vector<2x4xf32>, vector<4x64xf32>, vector<2x64xf32> -> vector<2x64xf32>
    %c0_13 = arith.constant 0 : index
    %c0_14 = arith.constant 0 : index
    %15 = vector.load %arg5[%c0_13, %c0_14] : memref<1x64xf32, #tpu.memory_space<vmem>>, vector<1x64xf32>
    %16 = vector.broadcast %15 : vector<1x64xf32> to vector<2x64xf32>
    %17 = arith.addf %14, %16 : vector<2x64xf32>
    %18 = vector.extract_strided_slice %17 {offsets = [0, 0], sizes = [1, 64], strides = [1, 1]} : vector<2x64xf32> to vector<1x64xf32>
    %cst_15 = arith.constant 1.000000e+00 : f32
    %19 = vector.broadcast %cst_15 : f32 to vector<1x64xf32>
    %20 = arith.addf %19, %18 : vector<1x64xf32>
    %21 = vector.extract_strided_slice %17 {offsets = [1, 0], sizes = [1, 64], strides = [1, 1]} : vector<2x64xf32> to vector<1x64xf32>
    %22 = arith.addf %20, %21 : vector<1x64xf32>
    %23 = arith.negf %22 : vector<1x64xf32>
    %24 = math.exp %23 : vector<1x64xf32>
    %cst_16 = arith.constant 1.000000e+00 : f32
    %25 = vector.broadcast %cst_16 : f32 to vector<1x64xf32>
    %26 = arith.addf %25, %24 : vector<1x64xf32>
    %27 = arith.divf %25, %26 : vector<1x64xf32>
    %28 = vector.shape_cast %27 : vector<1x64xf32> to vector<1x64x1xf32>
    %29 = vector.broadcast %28 : vector<1x64x1xf32> to vector<1x64x256xf32>
    %30 = arith.mulf %0, %29 : vector<1x64x256xf32>
    %c0_17 = arith.constant 0 : index
    %c0_18 = arith.constant 0 : index
    %c0_19 = arith.constant 0 : index
    %31 = vector.load %arg6[%c0_17, %c0_18, %c0_19] : memref<1x64x256xf32, #tpu.memory_space<vmem>>, vector<1x64x256xf32>
    tpu.vector_store %arg6[%c0_17, %c0_18, %c0_19], %30 {strides = array<i32>} : memref<1x64x256xf32, #tpu.memory_space<vmem>>, vector<1x64x256xf32>,
    return
  }
  func.func @transform_0(%arg0: i32) -> (i32, i32, i32) {
    %c0_i32 = arith.constant 0 : i32
    %c0_i32_0 = arith.constant 0 : i32
    %c0_i32_1 = arith.constant 0 : i32
    return %arg0, %c0_i32, %c0_i32_0 : i32, i32, i32
  }
  func.func @transform_1(%arg0: i32) -> (i32, i32) {
    %c0_i32 = arith.constant 0 : i32
    %c0_i32_0 = arith.constant 0 : i32
    %c0_i32_1 = arith.constant 0 : i32
    return %c0_i32, %c0_i32_0 : i32, i32
  }
  func.func @transform_2(%arg0: i32) -> (i32, i32) {
    %c0_i32 = arith.constant 0 : i32
    %c0_i32_0 = arith.constant 0 : i32
    %c0_i32_1 = arith.constant 0 : i32
    return %c0_i32, %c0_i32_0 : i32, i32
  }
  func.func @transform_3(%arg0: i32) -> (i32, i32) {
    %c0_i32 = arith.constant 0 : i32
    %c0_i32_0 = arith.constant 0 : i32
    %c0_i32_1 = arith.constant 0 : i32
    return %c0_i32, %c0_i32_0 : i32, i32
  }
  func.func @transform_4(%arg0: i32) -> (i32, i32) {
    %c0_i32 = arith.constant 0 : i32
    %c0_i32_0 = arith.constant 0 : i32
    %c0_i32_1 = arith.constant 0 : i32
    return %c0_i32, %c0_i32_0 : i32, i32
  }
  func.func @transform_5(%arg0: i32) -> (i32, i32, i32) {
    %c0_i32 = arith.constant 0 : i32
    %c0_i32_0 = arith.constant 0 : i32
    %c0_i32_1 = arith.constant 0 : i32
    return %arg0, %c0_i32, %c0_i32_0 : i32, i32, i32
  }
}

</mosaic_0001>

<llo_original>
// kernel: tpu_custom_call.1
$region0: #{tpu_custom_call.1}
  #allocation0 [shape = 'u32[]', space=smem, size = 0x4, offset = 0x4, fixed_abs, tag = 'smem constant byte address 0x4 - core index']
  #allocation1 [shape = 'u32[144,128]{1,0:T(1,128)}', space=vmem, size = 0x12000, scoped, tag = 'internal scratch']
  %s0 = inlined_call_operand.hbm [shape: f32[2,64,256], index: 0, kind: input, shape index: {}]
  %s1 = inlined_call_operand.vmem [shape: f32[64,4], index: 1, kind: input, shape index: {}]
  %s2 = inlined_call_operand.vmem [shape: f32[1,4], index: 2, kind: input, shape index: {}]
  %s3 = inlined_call_operand.vmem [shape: f32[4,64], index: 3, kind: input, shape index: {}]
  %s4 = inlined_call_operand.vmem [shape: f32[1,64], index: 4, kind: input, shape index: {}]
  %s5 = inlined_call_operand.hbm [shape: f32[2,64,256], index: 5, kind: output, shape index: {}]
  %s6 = sld [smem:[#allocation0]]
  $region57: #{tpu_custom_call.1} parent=0
    _
  %s8 = ssub.s32 1, %s6
  %s9 = scalar_select 0, %s8, %s6
  $region1: #{tpu_custom_call.1} parent=0
    #allocation2 [shape = 'u8[131072]{0}', space=vmem, size = 0x20000, scoped, tag = 'input window, operand 0']
    #allocation3 [shape = 's32[2]{0}', space=sflag, size = 0x8, scoped, tag = 'scoped memory for tpu_custom_call.1']
    #allocation4 [shape = 's32[2]{0}', space=sflag, size = 0x8, scoped, tag = 'scoped memory for tpu_custom_call.1']
    #allocation5 [shape = 'u8[131072]{0}', space=vmem, size = 0x20000, scoped, tag = 'output window, operand 0']
    %10 = vsyncpa [#allocation3], 0
    %s11 = scalar_lea.sflag [#allocation3], 1
    %12 = vsyncpa %s11, 0
    %13 = vsyncpa [#allocation4], 0
    %s14 = scalar_lea.sflag [#allocation4], 1
    %15 = vsyncpa %s14, 0
    loop: start=0, step=1, limit=4
    $region2: #{tpu_custom_call.1} parent=1 // loop_pre_header
      _
    $region3: #{tpu_custom_call.1} parent=1 // loop_header
      %s17 = sphi 0, %s21
      %p18 = scmp.ge.s32.totalorder %s17, 4
      %s27 = sphi 0, %s29
      %s30 = sphi 0, %s27
      %s31 = sphi 0, %s30
      %s47 = sphi 0, %s31
      %s51 = sphi 0, %s51
      %s53 = sphi 0, %s51
      %s54 = sphi 0, %s53
      %s68 = sphi 0, %s54
      %s72 = sphi 0, %s72
      %s74 = sphi 0, %s72
      %s75 = sphi 0, %s74
      %s89 = sphi 0, %s75
      %s93 = sphi 0, %s93
      %s95 = sphi 0, %s93
      %s96 = sphi 0, %s95
      %s110 = sphi 0, %s96
      %s114 = sphi 0, %s114
      %s116 = sphi 0, %s114
      %s117 = sphi 0, %s116
      %s131 = sphi 0, %s117
      %s137 = sphi 0, %s139
      %s140 = sphi 0, %s137
      %s141 = sphi 0, %s140
      %s157 = sphi 0, %s141
    $region4: #{tpu_custom_call.1} parent=1 // loop_header_branch
      %20 = sbr.rel (%p18) target = $region8
    $region5: #{tpu_custom_call.1} parent=1 // loop_body
      %s22 = ssub.s32 %s17, 1
      %s23 = ssub.s32 %s17, 2
      %s24 = sadd.s32 %s17, 1
      %s25 = ssub.s32 %s17, %s24
      %p26 = scmp.eq.s32.totalorder %s25, 0
      %s28 = sadd.s32 %s27, 1
      %s29 = scalar_select %p26, %s27, %s28
      %p32 = pneg %p26
      %p33 = scmp.eq.s32.totalorder %s17, 1
      %p34 = por %p32, %p33
      %p35 = scmp.ne.s32.totalorder %s27, %s30
      %p36 = scmp.eq.s32.totalorder %s17, 0
      %p37 = por %p35, %p36
      %p38 = scmp.ne.s32.totalorder %s27, %s30
      %p39 = scmp.eq.s32.totalorder %s22, 1
      %p40 = por %p38, %p39
      %p41 = scmp.ne.s32.totalorder %s30, %s31
      %p42 = scmp.eq.s32.totalorder %s22, 0
      %p43 = por %p41, %p42
      %p44 = scmp.ne.s32.totalorder %s30, %s31
      %p45 = scmp.eq.s32.totalorder %s23, 1
      %p46 = por %p44, %p45
      %p48 = scmp.ne.s32.totalorder %s31, %s47
      %p49 = scmp.eq.s32.totalorder %s23, 0
      %p50 = por %p48, %p49
      %s52 = sadd.s32 %s51, 1
      %p55 = scmp.eq.s32.totalorder %s17, 1
      %p56 = scmp.ne.s32.totalorder %s51, %s53
      %p57 = scmp.eq.s32.totalorder %s17, 0
      %p58 = por %p56, %p57
      %p59 = scmp.ne.s32.totalorder %s51, %s53
      %p60 = scmp.eq.s32.totalorder %s22, 1
      %p61 = por %p59, %p60
      %p62 = scmp.ne.s32.totalorder %s53, %s54
      %p63 = scmp.eq.s32.totalorder %s22, 0
      %p64 = por %p62, %p63
      %p65 = scmp.ne.s32.totalorder %s53, %s54
      %p66 = scmp.eq.s32.totalorder %s23, 1
      %p67 = por %p65, %p66
      %p69 = scmp.ne.s32.totalorder %s54, %s68
      %p70 = scmp.eq.s32.totalorder %s23, 0
      %p71 = por %p69, %p70
      %s73 = sadd.s32 %s72, 1
      %p76 = scmp.eq.s32.totalorder %s17, 1
      %p77 = scmp.ne.s32.totalorder %s72, %s74
      %p78 = scmp.eq.s32.totalorder %s17, 0
      %p79 = por %p77, %p78
      %p80 = scmp.ne.s32.totalorder %s72, %s74
      %p81 = scmp.eq.s32.totalorder %s22, 1
      %p82 = por %p80, %p81
      %p83 = scmp.ne.s32.totalorder %s74, %s75
      %p84 = scmp.eq.s32.totalorder %s22, 0
      %p85 = por %p83, %p84
      %p86 = scmp.ne.s32.totalorder %s74, %s75
      %p87 = scmp.eq.s32.totalorder %s23, 1
      %p88 = por %p86, %p87
      %p90 = scmp.ne.s32.totalorder %s75, %s89
      %p91 = scmp.eq.s32.totalorder %s23, 0
      %p92 = por %p90, %p91
      %s94 = sadd.s32 %s93, 1
      %p97 = scmp.eq.s32.totalorder %s17, 1
      %p98 = scmp.ne.s32.totalorder %s93, %s95
      %p99 = scmp.eq.s32.totalorder %s17, 0
      %p100 = por %p98, %p99
      %p101 = scmp.ne.s32.totalorder %s93, %s95
      %p102 = scmp.eq.s32.totalorder %s22, 1
      %p103 = por %p101, %p102
      %p104 = scmp.ne.s32.totalorder %s95, %s96
      %p105 = scmp.eq.s32.totalorder %s22, 0
      %p106 = por %p104, %p105
      %p107 = scmp.ne.s32.totalorder %s95, %s96
      %p108 = scmp.eq.s32.totalorder %s23, 1
      %p109 = por %p107, %p108
      %p111 = scmp.ne.s32.totalorder %s96, %s110
      %p112 = scmp.eq.s32.totalorder %s23, 0
      %p113 = por %p111, %p112
      %s115 = sadd.s32 %s114, 1
      %p118 = scmp.eq.s32.totalorder %s17, 1
      %p119 = scmp.ne.s32.totalorder %s114, %s116
      %p120 = scmp.eq.s32.totalorder %s17, 0
      %p121 = por %p119, %p120
      %p122 = scmp.ne.s32.totalorder %s114, %s116
      %p123 = scmp.eq.s32.totalorder %s22, 1
      %p124 = por %p122, %p123
      %p125 = scmp.ne.s32.totalorder %s116, %s117
      %p126 = scmp.eq.s32.totalorder %s22, 0
      %p127 = por %p125, %p126
      %p128 = scmp.ne.s32.totalorder %s116, %s117
      %p129 = scmp.eq.s32.totalorder %s23, 1
      %p130 = por %p128, %p129
      %p132 = scmp.ne.s32.totalorder %s117, %s131
      %p133 = scmp.eq.s32.totalorder %s23, 0
      %p134 = por %p132, %p133
      %s135 = ssub.s32 %s17, %s24
      %p136 = scmp.eq.s32.totalorder %s135, 0
      %s138 = sadd.s32 %s137, 1
      %s139 = scalar_select %p136, %s137, %s138
      %p142 = pneg %p136
      %p143 = scmp.eq.s32.totalorder %s17, 1
      %p144 = por %p142, %p143
      %p145 = scmp.ne.s32.totalorder %s137, %s140
      %p146 = scmp.eq.s32.totalorder %s17, 0
      %p147 = por %p145, %p146
      %p148 = scmp.ne.s32.totalorder %s137, %s140
      %p149 = scmp.eq.s32.totalorder %s22, 1
      %p150 = por %p148, %p149
      %p151 = scmp.ne.s32.totalorder %s140, %s141
      %p152 = scmp.eq.s32.totalorder %s22, 0
      %p153 = por %p151, %p152
      %p154 = scmp.ne.s32.totalorder %s140, %s141
      %p155 = scmp.eq.s32.totalorder %s23, 1
      %p156 = por %p154, %p155
      %p158 = scmp.ne.s32.totalorder %s141, %s157
      %p159 = scmp.eq.s32.totalorder %s23, 0
      %p160 = por %p158, %p159
      %p161 = scmp.le.s32.totalorder 1, %s17
      %p162 = scmp.lt.s32.totalorder %s17, 3
      %p163 = pnand %p161, %p162
      %p164 = pneg %p163
      // Predicated region
      $region9: #{tpu_custom_call.1} parent=5 // pred_check
        _
      $region10: #{tpu_custom_call.1} parent=5 // pred_check_branch
        %166 = sbr.rel (%p163) target = $region12
      $region11: #{tpu_custom_call.1} parent=5 // pred_region
        %s167 = ssub.s32 %s17, 1
        // Predicated region
        $region13: #{tpu_custom_call.1} parent=11 // pred_check
          %p168 = pneg %p64
        $region14: #{tpu_custom_call.1} parent=11 // pred_check_branch
          %170 = sbr.rel (%p168) target = $region16
        $region15: #{tpu_custom_call.1} parent=11 // pred_region
          _
        $region16: #{tpu_custom_call.1} parent=11 // pred_fallthru
          _
        // Predicated region
        $region17: #{tpu_custom_call.1} parent=11 // pred_check
          %p171 = pneg %p85
        $region18: #{tpu_custom_call.1} parent=11 // pred_check_branch
          %173 = sbr.rel (%p171) target = $region20
        $region19: #{tpu_custom_call.1} parent=11 // pred_region
          _
        $region20: #{tpu_custom_call.1} parent=11 // pred_fallthru
          _
        // Predicated region
        $region21: #{tpu_custom_call.1} parent=11 // pred_check
          %p174 = pneg %p106
        $region22: #{tpu_custom_call.1} parent=11 // pred_check_branch
          %176 = sbr.rel (%p174) target = $region24
        $region23: #{tpu_custom_call.1} parent=11 // pred_region
          _
        $region24: #{tpu_custom_call.1} parent=11 // pred_fallthru
          _
        // Predicated region
        $region25: #{tpu_custom_call.1} parent=11 // pred_check
          %p177 = pneg %p127
        $region26: #{tpu_custom_call.1} parent=11 // pred_check_branch
          %179 = sbr.rel (%p177) target = $region28
        $region27: #{tpu_custom_call.1} parent=11 // pred_region
          _
        $region28: #{tpu_custom_call.1} parent=11 // pred_fallthru
          _
      $region12: #{tpu_custom_call.1} parent=5 // pred_fallthru
        _
      %p180 = scmp.lt.s32.totalorder %s17, 2
      // Predicated region
      $region29: #{tpu_custom_call.1} parent=5 // pred_check
        %p181 = pneg %p180
      $region30: #{tpu_custom_call.1} parent=5 // pred_check_branch
        %183 = sbr.rel (%p181) target = $region32
      $region31: #{tpu_custom_call.1} parent=5 // pred_region
        // Predicated region
        $region33: #{tpu_custom_call.1} parent=31 // pred_check
          %p184 = pneg %p37
        $region34: #{tpu_custom_call.1} parent=31 // pred_check_branch
          %186 = sbr.rel (%p184) target = $region36
        $region35: #{tpu_custom_call.1} parent=31 // pred_region
          %s187 = sand.u32 %s27, 1
          %s188 = scalar_lea.sflag [#allocation3], %s187
          %s189 = sand.u32 %s27, 1
          %s190 = smul.addr %s189, 128
          %s191 = scalar_lea.vmem [#allocation2], %s190
          %s193 = ssub.s32 2048, 2048
          %194 = vsyncadd %s188, %s193
          %s195 = smul.addr %s17, 16
          %s196 = smul.addr %s195, 128
          %s197 = scalar_lea.hbm %s0, %s196
          %s198 = sshll.u32 %s191, 4
          %s199 = int_to_ptr.vmem [resolvable:$true] %s198
          %204 = dma.hbm_to_vmem [thread:$0]  %s197, 2048, %s199, %s188, 256, 256, 16
        $region36: #{tpu_custom_call.1} parent=31 // pred_fallthru
          _
      $region32: #{tpu_custom_call.1} parent=5 // pred_fallthru
        _
      %p205 = scmp.le.s32.totalorder 1, %s17
      %p206 = scmp.lt.s32.totalorder %s17, 3
      %p207 = pnand %p205, %p206
      %p208 = pneg %p207
      // Predicated region
      $region37: #{tpu_custom_call.1} parent=5 // pred_check
        _
      $region38: #{tpu_custom_call.1} parent=5 // pred_check_branch
        %210 = sbr.rel (%p207) target = $region40
      $region39: #{tpu_custom_call.1} parent=5 // pred_region
        %s211 = ssub.s32 %s17, 1
        %s212 = sand.u32 %s30, 1
        %s213 = scalar_lea.sflag [#allocation3], %s212
        %s214 = sand.u32 %s30, 1
        %s215 = smul.addr %s214, 128
        %s216 = scalar_lea.vmem [#allocation2], %s215
        // Predicated region
        $region41: #{tpu_custom_call.1} parent=39 // pred_check
          %p217 = pneg %p43
        $region42: #{tpu_custom_call.1} parent=39 // pred_check_branch
          %219 = sbr.rel (%p217) target = $region44
        $region43: #{tpu_custom_call.1} parent=39 // pred_region
          %220 = dma.done %s213, 2048
        $region44: #{tpu_custom_call.1} parent=39 // pred_fallthru
          _
        %s221 = sand.u32 %s30, 1
        %s222 = scalar_lea.sflag [#allocation3], %s221
        %s223 = sand.u32 %s30, 1
        %s224 = smul.addr %s223, 128
        %s225 = scalar_lea.vmem [#allocation2], %s224
        %p226 = pneg %p43
        %p227 = pneg %p40
        %p228 = pneg %p64
        %p229 = pneg %p61
        %p230 = pneg %p85
        %p231 = pneg %p82
        %p232 = pneg %p106
        %p233 = pneg %p103
        %p234 = pneg %p127
        %p235 = pneg %p124
        %p236 = pneg %p153
        %p237 = pneg %p150
        %s238 = sand.u32 %s140, 1
        %s239 = scalar_lea.sflag [#allocation4], %s238
        %s240 = sand.u32 %s140, 1
        %s241 = smul.addr %s240, 128
        %s242 = scalar_lea.vmem [#allocation5], %s241
        %v243 = vld [vmem:[%s216] sm:$0xff]
        %v244 = vld [vmem:[%s216 + $0x8] sm:$0xff]
        %v245 = vld [vmem:[%s216 + $0x10] sm:$0xff]
        %v246 = vld [vmem:[%s216 + $0x18] sm:$0xff]
        %v247 = vld [vmem:[%s216 + $0x20] sm:$0xff]
        %v248 = vld [vmem:[%s216 + $0x28] sm:$0xff]
        %v249 = vld [vmem:[%s216 + $0x30] sm:$0xff]
        %v250 = vld [vmem:[%s216 + $0x38] sm:$0xff]
        %v251 = vld [vmem:[%s216 + $0x40] sm:$0xff]
        %v252 = vld [vmem:[%s216 + $0x48] sm:$0xff]
        %v253 = vld [vmem:[%s216 + $0x50] sm:$0xff]
        %v254 = vld [vmem:[%s216 + $0x58] sm:$0xff]
        %v255 = vld [vmem:[%s216 + $0x60] sm:$0xff]
        %v256 = vld [vmem:[%s216 + $0x68] sm:$0xff]
        %v257 = vld [vmem:[%s216 + $0x70] sm:$0xff]
        %v258 = vld [vmem:[%s216 + $0x78] sm:$0xff]
        %v259 = vadd.f32 %v243, %v244
        %260 = vadd.xlane.f32.xlu0 %v259
        %v261 = vpop.xlane.xlu0 %260
        %v262 = vadd.f32 %v245, %v246
        %263 = vadd.xlane.f32.xlu0 %v262
        %v264 = vpop.xlane.xlu0 %263
        %v265 = vadd.f32 %v247, %v248
        %266 = vadd.xlane.f32.xlu0 %v265
        %v267 = vpop.xlane.xlu0 %266
        %v268 = vadd.f32 %v249, %v250
        %269 = vadd.xlane.f32.xlu0 %v268
        %v270 = vpop.xlane.xlu0 %269
        %v271 = vadd.f32 %v251, %v252
        %272 = vadd.xlane.f32.xlu0 %v271
        %v273 = vpop.xlane.xlu0 %272
        %v274 = vadd.f32 %v253, %v254
        %275 = vadd.xlane.f32.xlu0 %v274
        %v276 = vpop.xlane.xlu0 %275
        %v277 = vadd.f32 %v255, %v256
        %278 = vadd.xlane.f32.xlu0 %v277
        %v279 = vpop.xlane.xlu0 %278
        %v280 = vadd.f32 %v257, %v258
        %281 = vadd.xlane.f32.xlu0 %v280
        %v282 = vpop.xlane.xlu0 %281
        %v283 = vmul.f32 %v261, 0.00390625
        %v284 = vmul.f32 %v264, 0.00390625
        %v285 = vmul.f32 %v267, 0.00390625
        %v286 = vmul.f32 %v270, 0.00390625
        %v287 = vmul.f32 %v273, 0.00390625
        %v288 = vmul.f32 %v276, 0.00390625
        %v289 = vmul.f32 %v279, 0.00390625
        %v290 = vmul.f32 %v282, 0.00390625
        %v291 = vmax.f32 %v243, %v244
        %292 = vmax.xlane.f32.xlu0 %v291
        %v293 = vpop.xlane.xlu0 %292
        %v294 = vmax.f32 %v245, %v246
        %295 = vmax.xlane.f32.xlu0 %v294
        %v296 = vpop.xlane.xlu0 %295
        %v297 = vmax.f32 %v247, %v248
        %298 = vmax.xlane.f32.xlu0 %v297
        %v299 = vpop.xlane.xlu0 %298
        %v300 = vmax.f32 %v249, %v250
        %301 = vmax.xlane.f32.xlu0 %v300
        %v302 = vpop.xlane.xlu0 %301
        %v303 = vmax.f32 %v251, %v252
        %304 = vmax.xlane.f32.xlu0 %v303
        %v305 = vpop.xlane.xlu0 %304
        %v306 = vmax.f32 %v253, %v254
        %307 = vmax.xlane.f32.xlu0 %v306
        %v308 = vpop.xlane.xlu0 %307
        %v309 = vmax.f32 %v255, %v256
        %310 = vmax.xlane.f32.xlu0 %v309
        %v311 = vpop.xlane.xlu0 %310
        %v312 = vmax.f32 %v257, %v258
        %313 = vmax.xlane.f32.xlu0 %v312
        %v314 = vpop.xlane.xlu0 %313
        %v323 = vlaneseq
        %v324 = vand.u32 %v323, 127
        %v325 = vlaneseq
        %v326 = vshrl.u32 %v325, 7
        %v327 = vsub.s32 %v324, %v326
        %v328 = vrot.slane %v283, %v327
        %v329 = vadd.s32 %v324, 4294967288
        %v330 = vlaneseq
        %v331 = vshrl.u32 %v330, 7
        %v332 = vsub.s32 %v329, %v331
        %v333 = vrot.slane %v284, %v332
        %vm334 = vcmask 130112
        %v335 = vsel %vm334, %v333, %v328
        %v336 = vadd.s32 %v324, 4294967280
        %v337 = vlaneseq
        %v338 = vshrl.u32 %v337, 7
        %v339 = vsub.s32 %v336, %v338
        %v340 = vrot.slane %v285, %v339
        %vm341 = vcmask 195712
        %v342 = vsel %vm341, %v340, %v335
        %v343 = vadd.s32 %v324, 4294967272
        %v344 = vlaneseq
        %v345 = vshrl.u32 %v344, 7
        %v346 = vsub.s32 %v343, %v345
        %v347 = vrot.slane %v286, %v346
        %vm348 = vcmask 261312
        %v349 = vsel %vm348, %v347, %v342
        %v350 = vadd.s32 %v324, 4294967264
        %v351 = vlaneseq
        %v352 = vshrl.u32 %v351, 7
        %v353 = vsub.s32 %v350, %v352
        %v354 = vrot.slane %v287, %v353
        %vm355 = vcmask 326912
        %v356 = vsel %vm355, %v354, %v349
        %v357 = vadd.s32 %v324, 4294967256
        %v358 = vlaneseq
        %v359 = vshrl.u32 %v358, 7
        %v360 = vsub.s32 %v357, %v359
        %v361 = vrot.slane %v288, %v360
        %vm362 = vcmask 392512
        %v363 = vsel %vm362, %v361, %v356
        %v364 = vadd.s32 %v324, 4294967248
        %v365 = vlaneseq
        %v366 = vshrl.u32 %v365, 7
        %v367 = vsub.s32 %v364, %v366
        %v368 = vrot.slane %v289, %v367
        %vm369 = vcmask 458112
        %v370 = vsel %vm369, %v368, %v363
        %v371 = vadd.s32 %v324, 4294967240
        %v372 = vlaneseq
        %v373 = vshrl.u32 %v372, 7
        %v374 = vsub.s32 %v371, %v373
        %v375 = vrot.slane %v290, %v374
        %vm376 = vcmask 523712
        %v377 = vsel %vm376, %v375, %v370
        %v387 = vlaneseq
        %v388 = vshrl.u32 %v387, 7
        %v389 = vsub.s32 %v324, %v388
        %v390 = vrot.slane %v293, %v389
        %v391 = vlaneseq
        %v392 = vshrl.u32 %v391, 7
        %v393 = vsub.s32 %v329, %v392
        %v394 = vrot.slane %v296, %v393
        %v395 = vsel %vm334, %v394, %v390
        %v396 = vlaneseq
        %v397 = vshrl.u32 %v396, 7
        %v398 = vsub.s32 %v336, %v397
        %v399 = vrot.slane %v299, %v398
        %v400 = vsel %vm341, %v399, %v395
        %v401 = vlaneseq
        %v402 = vshrl.u32 %v401, 7
        %v403 = vsub.s32 %v343, %v402
        %v404 = vrot.slane %v302, %v403
        %v405 = vsel %vm348, %v404, %v400
        %v406 = vlaneseq
        %v407 = vshrl.u32 %v406, 7
        %v408 = vsub.s32 %v350, %v407
        %v409 = vrot.slane %v305, %v408
        %v410 = vsel %vm355, %v409, %v405
        %v411 = vlaneseq
        %v412 = vshrl.u32 %v411, 7
        %v413 = vsub.s32 %v357, %v412
        %v414 = vrot.slane %v308, %v413
        %v415 = vsel %vm362, %v414, %v410
        %v416 = vlaneseq
        %v417 = vshrl.u32 %v416, 7
        %v418 = vsub.s32 %v364, %v417
        %v419 = vrot.slane %v311, %v418
        %v420 = vsel %vm369, %v419, %v415
        %v421 = vlaneseq
        %v422 = vshrl.u32 %v421, 7
        %v423 = vsub.s32 %v371, %v422
        %v424 = vrot.slane %v314, %v423
        %v425 = vsel %vm376, %v424, %v420
        %vm427 = vcmask 1040384
        %v428 = vsel %vm427, %v377, %v425
        %v429 = vld [vmem:[%s1] sm:$0xff]
        %v430 = vld [vmem:[%s1 + $0x8] sm:$0xff]
        %v431 = vld [vmem:[%s1 + $0x10] sm:$0xff]
        %v432 = vld [vmem:[%s1 + $0x18] sm:$0xff]
        %v433 = vld [vmem:[%s1 + $0x20] sm:$0xff]
        %v434 = vld [vmem:[%s1 + $0x28] sm:$0xff]
        %v435 = vld [vmem:[%s1 + $0x30] sm:$0xff]
        %v436 = vld [vmem:[%s1 + $0x38] sm:$0xff]
        %v437 = vld [vmem:[%s2] sm:$0x1]
        %v439 = vlaneseq
        %v440 = vshrl.u32 %v439, 7
        %v441 = vsub.s32 0, %v440
        %v442 = vrot.slane %v437, %v441
        %vm444 = vcmask 523264
        %v446 = vsel %vm444, %v428, 0
        %448 = vmatprep.subr.mxu0 0.0
        %449 = vmatpush1.msra.mxu0 0.0
        %450 = vmatprep.subr.mxu0 0.0
        %451 = vmatpush1.msra.mxu0 0.0
        %452 = vmatprep.subr.mxu0 0.0
        %453 = vmatpush1.msra.mxu0 0.0
        %454 = vmatprep.subr.mxu0 0.0
        %455 = vmatpush1.msra.mxu0 0.0
        %456 = vmatprep.subr.mxu0 0.0
        %457 = vmatpush1.msra.mxu0 0.0
        %458 = vmatprep.subr.mxu0 0.0
        %459 = vmatpush1.msra.mxu0 0.0
        %460 = vmatprep.subr.mxu0 0.0
        %461 = vmatpush1.msra.mxu0 0.0
        %462 = vmatprep.subr.mxu0 0.0
        %463 = vmatpush1.msra.mxu0 0.0
        %464 = vmatprep.subr.mxu0 0.0
        %465 = vmatpush1.msra.mxu0 %v436
        %466 = vmatprep.subr.mxu0 0.0
        %467 = vmatpush1.msra.mxu0 %v435
        %468 = vmatprep.subr.mxu0 0.0
        %469 = vmatpush1.msra.mxu0 %v434
        %470 = vmatprep.subr.mxu0 0.0
        %471 = vmatpush1.msra.mxu0 %v433
        %472 = vmatprep.subr.mxu0 0.0
        %473 = vmatpush1.msra.mxu0 %v432
        %474 = vmatprep.subr.mxu0 0.0
        %475 = vmatpush1.msra.mxu0 %v431
        %476 = vmatprep.subr.mxu0 0.0
        %477 = vmatpush1.msra.mxu0 %v430
        %478 = vmatprep.subr.mxu0 0.0
        %479 = vmatpush1.msra.mxu0 %v429
        %480 = vmatprep.subr.mxu0 0.0
        %481 = vmatpush2.msra.mxu0 0.0
        %482 = vmatprep.subr.mxu0 0.0
        %483 = vmatpush2.msra.mxu0 0.0
        %484 = vmatprep.subr.mxu0 0.0
        %485 = vmatpush2.msra.mxu0 0.0
        %486 = vmatprep.subr.mxu0 0.0
        %487 = vmatpush2.msra.mxu0 0.0
        %488 = vmatprep.subr.mxu0 0.0
        %489 = vmatpush2.msra.mxu0 0.0
        %490 = vmatprep.subr.mxu0 0.0
        %491 = vmatpush2.msra.mxu0 0.0
        %492 = vmatprep.subr.mxu0 0.0
        %493 = vmatpush2.msra.mxu0 0.0
        %494 = vmatprep.subr.mxu0 0.0
        %495 = vmatpush2.msra.mxu0 0.0
        %496 = vmatprep.subr.mxu0 0.0
        %497 = vmatpush2.msra.mxu0 0.0
        %498 = vmatprep.subr.mxu0 0.0
        %499 = vmatpush2.msra.mxu0 0.0
        %500 = vmatprep.subr.mxu0 0.0
        %501 = vmatpush2.msra.mxu0 0.0
        %502 = vmatprep.subr.mxu0 0.0
        %503 = vmatpush2.msra.mxu0 0.0
        %504 = vmatprep.subr.mxu0 0.0
        %505 = vmatpush2.msra.mxu0 0.0
        %506 = vmatprep.subr.mxu0 0.0
        %507 = vmatpush2.msra.mxu0 0.0
        %508 = vmatprep.subr.mxu0 0.0
        %509 = vmatpush2.msra.mxu0 0.0
        %510 = vmatprep.subr.mxu0 0.0
        %511 = vmatpush2.msra.mxu0 0.0
        %512 = vmatprep.mubr.f32.mxu0 0.0
        %513 = vmatmul.mubr.f32.gmra.mxu0 %v446
        %v514 = vpop.f32.mrf.mxu0
        %v515 = vadd.f32 %v442, %v514
        %v516 = vpop.f32.mrf.mxu0
        %517 = vdwg.mxu0
        %v518 = vmax.f32 %v515, 0.0
        %v519 = vld [vmem:[%s3] sm:$0xf]
        %v520 = vld [vmem:[%s4] sm:$0x1]
        %v522 = vlaneseq
        %v523 = vshrl.u32 %v522, 7
        %v524 = vsub.s32 0, %v523
        %v525 = vrot.slane %v520, %v524
        %vm527 = vcmask 31744
        %v529 = vsel %vm527, %v518, 0
        %vm531 = vcmask 1043456
        %v533 = vsel %vm531, %v519, 0
        %535 = vmatprep.subr.mxu0 0.0
        %536 = vmatpush1.msra.mxu0 0.0
        %537 = vmatprep.subr.mxu0 0.0
        %538 = vmatpush1.msra.mxu0 0.0
        %539 = vmatprep.subr.mxu0 0.0
        %540 = vmatpush1.msra.mxu0 0.0
        %541 = vmatprep.subr.mxu0 0.0
        %542 = vmatpush1.msra.mxu0 0.0
        %543 = vmatprep.subr.mxu0 0.0
        %544 = vmatpush1.msra.mxu0 0.0
        %545 = vmatprep.subr.mxu0 0.0
        %546 = vmatpush1.msra.mxu0 0.0
        %547 = vmatprep.subr.mxu0 0.0
        %548 = vmatpush1.msra.mxu0 0.0
        %549 = vmatprep.subr.mxu0 0.0
        %550 = vmatpush1.msra.mxu0 0.0
        %551 = vmatprep.subr.mxu0 0.0
        %552 = vmatpush1.msra.mxu0 0.0
        %553 = vmatprep.subr.mxu0 0.0
        %554 = vmatpush1.msra.mxu0 0.0
        %555 = vmatprep.subr.mxu0 0.0
        %556 = vmatpush1.msra.mxu0 0.0
        %557 = vmatprep.subr.mxu0 0.0
        %558 = vmatpush1.msra.mxu0 0.0
        %559 = vmatprep.subr.mxu0 0.0
        %560 = vmatpush1.msra.mxu0 0.0
        %561 = vmatprep.subr.mxu0 0.0
        %562 = vmatpush1.msra.mxu0 0.0
        %563 = vmatprep.subr.mxu0 0.0
        %564 = vmatpush1.msra.mxu0 0.0
        %565 = vmatprep.subr.mxu0 0.0
        %566 = vmatpush1.msra.mxu0 %v533
        %567 = vmatprep.subr.mxu0 0.0
        %568 = vmatpush2.msra.mxu0 0.0
        %569 = vmatprep.subr.mxu0 0.0
        %570 = vmatpush2.msra.mxu0 0.0
        %571 = vmatprep.subr.mxu0 0.0
        %572 = vmatpush2.msra.mxu0 0.0
        %573 = vmatprep.subr.mxu0 0.0
        %574 = vmatpush2.msra.mxu0 0.0
        %575 = vmatprep.subr.mxu0 0.0
        %576 = vmatpush2.msra.mxu0 0.0
        %577 = vmatprep.subr.mxu0 0.0
        %578 = vmatpush2.msra.mxu0 0.0
        %579 = vmatprep.subr.mxu0 0.0
        %580 = vmatpush2.msra.mxu0 0.0
        %581 = vmatprep.subr.mxu0 0.0
        %582 = vmatpush2.msra.mxu0 0.0
        %583 = vmatprep.subr.mxu0 0.0
        %584 = vmatpush2.msra.mxu0 0.0
        %585 = vmatprep.subr.mxu0 0.0
        %586 = vmatpush2.msra.mxu0 0.0
        %587 = vmatprep.subr.mxu0 0.0
        %588 = vmatpush2.msra.mxu0 0.0
        %589 = vmatprep.subr.mxu0 0.0
        %590 = vmatpush2.msra.mxu0 0.0
        %591 = vmatprep.subr.mxu0 0.0
        %592 = vmatpush2.msra.mxu0 0.0
        %593 = vmatprep.subr.mxu0 0.0
        %594 = vmatpush2.msra.mxu0 0.0
        %595 = vmatprep.subr.mxu0 0.0
        %596 = vmatpush2.msra.mxu0 0.0
        %597 = vmatprep.subr.mxu0 0.0
        %598 = vmatpush2.msra.mxu0 0.0
        %599 = vmatprep.mubr.f32.mxu0 0.0
        %600 = vmatmul.mubr.f32.gmra.mxu0 %v529
        %v601 = vpop.f32.mrf.mxu0
        %v602 = vadd.f32 %v525, %v601
        %v603 = vpop.f32.mrf.mxu0
        %604 = vdwg.mxu0
        %v605 = vadd.f32 %v602, 1.0
        %v607 = vrot.slane %v602, 1
        %v609 = vadd.f32 %v605, %v607
        %v610 = vxor.u32 %v609, 2147483648
        %v611 = vmul.f32 %v610, 1.442695
        %v612 = vpow.pop %v611
        %v613 = vadd.f32 %v612, 1.0
        %v614 = vrcp.pop %v613
        %v615 = vmul.f32 1.0, %v614
        %v616 = vlaneseq
        %v617 = vshrl.u32 %v616, 7
        %v618 = vsub.s32 0, %v617
        %v619 = vrot.slane %v615, %v618
        %621 = vbcast.lane.b32.xlu0 %v619, 256
        %v622 = vpop.permute.xlu0 %621
        %s624 = sor.u32 256, 8
        %625 = vbcast.lane.b32.xlu0 %v619, %s624
        %v626 = vpop.permute.xlu0 %625
        %s628 = sor.u32 256, 16
        %629 = vbcast.lane.b32.xlu0 %v619, %s628
        %v630 = vpop.permute.xlu0 %629
        %s632 = sor.u32 256, 24
        %633 = vbcast.lane.b32.xlu0 %v619, %s632
        %v634 = vpop.permute.xlu0 %633
        %s636 = sor.u32 256, 32
        %637 = vbcast.lane.b32.xlu0 %v619, %s636
        %v638 = vpop.permute.xlu0 %637
        %s640 = sor.u32 256, 40
        %641 = vbcast.lane.b32.xlu0 %v619, %s640
        %v642 = vpop.permute.xlu0 %641
        %s644 = sor.u32 256, 48
        %645 = vbcast.lane.b32.xlu0 %v619, %s644
        %v646 = vpop.permute.xlu0 %645
        %s648 = sor.u32 256, 56
        %649 = vbcast.lane.b32.xlu0 %v619, %s648
        %v650 = vpop.permute.xlu0 %649
        %v651 = vmul.f32 %v243, %v622
        %v652 = vmul.f32 %v244, %v622
        %v653 = vmul.f32 %v245, %v626
        %v654 = vmul.f32 %v246, %v626
        %v655 = vmul.f32 %v247, %v630
        %v656 = vmul.f32 %v248, %v630
        %v657 = vmul.f32 %v249, %v634
        %v658 = vmul.f32 %v250, %v634
        %v659 = vmul.f32 %v251, %v638
        %v660 = vmul.f32 %v252, %v638
        %v661 = vmul.f32 %v253, %v642
        %v662 = vmul.f32 %v254, %v642
        %v663 = vmul.f32 %v255, %v646
        %v664 = vmul.f32 %v256, %v646
        %v665 = vmul.f32 %v257, %v650
        %v666 = vmul.f32 %v258, %v650
        %667 = vst [vmem:[%s242] sm:$0xff] %v651
        %668 = vst [vmem:[%s242 + $0x8] sm:$0xff] %v652
        %669 = vst [vmem:[%s242 + $0x10] sm:$0xff] %v653
        %670 = vst [vmem:[%s242 + $0x18] sm:$0xff] %v654
        %671 = vst [vmem:[%s242 + $0x20] sm:$0xff] %v655
        %672 = vst [vmem:[%s242 + $0x28] sm:$0xff] %v656
        %673 = vst [vmem:[%s242 + $0x30] sm:$0xff] %v657
        %674 = vst [vmem:[%s242 + $0x38] sm:$0xff] %v658
        %675 = vst [vmem:[%s242 + $0x40] sm:$0xff] %v659
        %676 = vst [vmem:[%s242 + $0x48] sm:$0xff] %v660
        %677 = vst [vmem:[%s242 + $0x50] sm:$0xff] %v661
        %678 = vst [vmem:[%s242 + $0x58] sm:$0xff] %v662
        %679 = vst [vmem:[%s242 + $0x60] sm:$0xff] %v663
        %680 = vst [vmem:[%s242 + $0x68] sm:$0xff] %v664
        %681 = vst [vmem:[%s242 + $0x70] sm:$0xff] %v665
        %682 = vst [vmem:[%s242 + $0x78] sm:$0xff] %v666
        %s683 = sand.u32 %s140, 1
        %s684 = scalar_lea.sflag [#allocation4], %s683
        %s685 = sand.u32 %s140, 1
        %s686 = smul.addr %s685, 128
        %s687 = scalar_lea.vmem [#allocation5], %s686
        // Predicated region
        $region45: #{tpu_custom_call.1} parent=39 // pred_check
          %p688 = pneg %p150
        $region46: #{tpu_custom_call.1} parent=39 // pred_check_branch
          %690 = sbr.rel (%p688) target = $region48
        $region47: #{tpu_custom_call.1} parent=39 // pred_region
          %s692 = ssub.s32 2048, 2048
          %693 = vsyncadd %s684, %s692
          %s694 = smul.addr %s22, 16
          %s695 = smul.addr %s694, 128
          %s696 = scalar_lea.hbm %s5, %s695
          %s697 = sshll.u32 %s687, 4
          %s698 = int_to_ptr.vmem [resolvable:$true] %s697
          %703 = dma.vmem_to_hbm [thread:$0]  %s698, 2048, %s696, %s684, 256, 256, 16
        $region48: #{tpu_custom_call.1} parent=39 // pred_fallthru
          _
      $region40: #{tpu_custom_call.1} parent=5 // pred_fallthru
        _
      %p704 = scmp.le.s32.totalorder 2, %s17
      // Predicated region
      $region49: #{tpu_custom_call.1} parent=5 // pred_check
        %p705 = pneg %p704
      $region50: #{tpu_custom_call.1} parent=5 // pred_check_branch
        %707 = sbr.rel (%p705) target = $region52
      $region51: #{tpu_custom_call.1} parent=5 // pred_region
        %s708 = ssub.s32 %s17, 2
        // Predicated region
        $region53: #{tpu_custom_call.1} parent=51 // pred_check
          %p709 = pneg %p156
        $region54: #{tpu_custom_call.1} parent=51 // pred_check_branch
          %711 = sbr.rel (%p709) target = $region56
        $region55: #{tpu_custom_call.1} parent=51 // pred_region
          %s712 = sand.u32 %s141, 1
          %s713 = scalar_lea.sflag [#allocation4], %s712
          %s714 = sand.u32 %s141, 1
          %s715 = smul.addr %s714, 128
          %s716 = scalar_lea.vmem [#allocation5], %s715
          %717 = dma.done %s713, 2048
        $region56: #{tpu_custom_call.1} parent=51 // pred_fallthru
          _
      $region52: #{tpu_custom_call.1} parent=5 // pred_fallthru
        _
    $region6: #{tpu_custom_call.1} parent=1 // loop_footer
      %s21 = sadd.s32 1, %s17
    $region7: #{tpu_custom_call.1} parent=1 // loop_footer_branch
      %16 = sbr.rel target = $region3
    $region8: #{tpu_custom_call.1} parent=1 // loop_exit
      _
    %718 = vsyncpa [#allocation3], 1
    %s719 = scalar_lea.sflag [#allocation3], 1
    %720 = vsyncpa %s719, 1
    %721 = vsyncpa [#allocation4], 1
    %s722 = scalar_lea.sflag [#allocation4], 1
    %723 = vsyncpa %s722, 1

</llo_original>
